<compile_context>
chip_gen: v7x
topology: tpu7x:2x2x1
jax: 0.10.0
libtpu: 0.0.40
codegen_flags: <defaults>
</compile_context>

<pallas_src>
import numpy as np
import jax
import jax.numpy as jnp
from jax import lax
from jax.experimental import pallas as pl
from jax.experimental.pallas import tpu as pltpu


def _clip_loss_kernel(scale_ref, g_ref, t_ref, loss_ref, acc_ref,
                      cmax_ref, csum_ref, cdiag_ref, loss1_ref, corr1_ref):
    i = pl.program_id(0)
    tq = g_ref.shape[0]
    b = t_ref.shape[0]

    # Fold logit_scale (SMEM scalar) into the (TQ, d) gnn tile: O(TQ*d) work
    # instead of an O(TQ*B) multiply of the logits plane.  Multiply in f32,
    # cast back to the MXU input dtype; accumulation stays f32.
    scale = scale_ref[0]
    g_scaled = (scale * g_ref[...].astype(jnp.float32)).astype(g_ref.dtype)

    # Single (TQ, B) MXU matmul in the native (bf16) input dtype, f32 acc.
    # logits2 == logits1.T exactly, so the text->gnn direction reuses it.
    logits = lax.dot_general(
        g_scaled, t_ref[...],
        dimension_numbers=(((1,), (1,)), ((), ())),
        preferred_element_type=jnp.float32)

    row_start = i * tq
    row_ids = row_start + lax.broadcasted_iota(jnp.int32, (tq, 1), 0)  # global row id
    col_ids = lax.broadcasted_iota(jnp.int32, (tq, b), 1)

    # Diagonal of the full (B, B) logits, sliced bit-consistently out of the
    # same MXU result used for the max / LSE statistics.
    diag_plane = jnp.where(col_ids == row_ids, logits, 0.0)               # (TQ, B)
    diag_col = jnp.sum(diag_plane, axis=1, keepdims=True)                 # (TQ, 1)
    diag_row = jnp.sum(diag_plane, axis=0, keepdims=True)                 # (1, B), nonzero only in this tile's columns

    # ---- direction 1 (gnn @ text.T): row-wise reductions -------------------
    row_max = jnp.max(logits, axis=-1, keepdims=True)                     # (TQ, 1)
    row_sum = jnp.sum(jnp.exp(logits - row_max), axis=-1, keepdims=True)  # (TQ, 1)
    row_lse = row_max + jnp.log(row_sum)                                  # (TQ, 1)

    tile_loss1 = jnp.sum(row_lse - diag_col, keepdims=True)               # (1, 1)
    # A row is "correct" when its diagonal attains the row max (bit-exact
    # comparison, same logits plane; relaxed tie-break vs torch.argmax).
    tile_corr1 = jnp.sum((diag_col >= row_max).astype(jnp.float32),
                         keepdims=True)                                   # (1, 1)

    # ---- direction 2 (text @ gnn.T == logits.T): streaming column stats ----
    t_cmax = jnp.max(logits, axis=0, keepdims=True)                       # (1, B)
    t_csum = jnp.sum(jnp.exp(logits - t_cmax), axis=0, keepdims=True)     # (1, B)

    @pl.when(i == 0)
    def _init():
        cmax_ref[...] = t_cmax
        csum_ref[...] = t_csum
        cdiag_ref[...] = diag_row
        loss1_ref[...] = tile_loss1
        corr1_ref[...] = tile_corr1

    @pl.when(i > 0)
    def _accumulate():
        prev_max = cmax_ref[...]
        new_max = jnp.maximum(prev_max, t_cmax)
        csum_ref[...] = (csum_ref[...] * jnp.exp(prev_max - new_max)
                         + t_csum * jnp.exp(t_cmax - new_max))
        cmax_ref[...] = new_max
        cdiag_ref[...] += diag_row
        loss1_ref[...] += tile_loss1
        corr1_ref[...] += tile_corr1

    @pl.when(i == pl.num_programs(0) - 1)
    def _finalize():
        col_lse = cmax_ref[...] + jnp.log(csum_ref[...])                  # (1, B)
        cdiag = cdiag_ref[...]                                            # diag(logits.T) == diag(logits)
        loss2 = jnp.sum(col_lse - cdiag, keepdims=True)                   # (1, 1)
        corr2 = jnp.sum((cdiag >= cmax_ref[...]).astype(jnp.float32),
                        keepdims=True)                                    # (1, 1)
        half_inv_b = jnp.float32(0.5 / b)
        loss_ref[...] = (loss1_ref[...] + loss2) * half_inv_b
        acc_ref[...] = (corr1_ref[...] + corr2) * half_inv_b


def _vmem_limit_bytes():
    """Per-generation scoped-VMEM limit (with headroom for compiler scratch)."""
    cap = None
    try:
        cap = getattr(pltpu.get_tpu_info(), "vmem_capacity_bytes", None)
    except Exception:
        cap = None
    if not cap:
        cap = 64 * 1024 * 1024          # conservative: v7x physical VMEM
    return min(int(cap * 3 // 4), 112 * 1024 * 1024)


def _pick_tile(b, d, itemsize, budget_bytes):
    """Largest row tile whose per-step working set fits the VMEM budget."""
    # Resident text (single-buffered) + three (1, B) f32 streaming scratches
    # (each padded to 8 sublanes).
    fixed = b * d * itemsize + 3 * 8 * b * 4
    candidates = [c for c in (512, 256, 128, 64, 32, 16, 8)
                  if c <= b and b % c == 0]
    if not candidates:
        candidates = [b]                # odd batch: single tile
    for tq in candidates:
        live = (2 * tq * d * itemsize   # double-buffered gnn row tile
                + 5 * tq * b * 4)       # ~5 live (TQ, B) f32/select planes
        if fixed + live <= budget_bytes:
            return tq
    return candidates[-1]


def clip_loss(gnn_features, text_features, logit_scale, *, tq=None,
              mxu_dtype=jnp.bfloat16):
    """Pallas TPU forward of CLIPLoss: returns (loss, acc)."""
    b, d = gnn_features.shape
    assert text_features.shape == (b, d)

    g, t = gnn_features, text_features
    if mxu_dtype is not None and g.dtype != mxu_dtype:
        # Unit-normalized CLIP features: feed the MXU in bf16 (f32 accumulate
        # in-kernel).  Pass mxu_dtype=None to keep the native dtype.
        g = g.astype(mxu_dtype)
        t = t.astype(mxu_dtype)

    vmem_limit = _vmem_limit_bytes()
    if tq is None:
        tq = _pick_tile(b, d, jnp.dtype(g.dtype).itemsize, int(vmem_limit * 0.85))
    assert b % tq == 0, "row tile must divide the batch"
    n_tiles = b // tq

    scale = jnp.reshape(jnp.asarray(logit_scale, jnp.float32), (1,))

    out_shape = (jax.ShapeDtypeStruct((1, 1), jnp.float32),
                 jax.ShapeDtypeStruct((1, 1), jnp.float32))
    out_specs = (pl.BlockSpec((1, 1), lambda i: (0, 0)),
                 pl.BlockSpec((1, 1), lambda i: (0, 0)))
    scratch_shapes = [
        pltpu.VMEM((1, b), jnp.float32),   # running column max
        pltpu.VMEM((1, b), jnp.float32),   # running column sum-exp
        pltpu.VMEM((1, b), jnp.float32),   # diagonal of logits, by column
        pltpu.VMEM((1, 1), jnp.float32),   # sum of (row_lse - diag)
        pltpu.VMEM((1, 1), jnp.float32),   # direction-1 correct count
    ]
    compiler_params = pltpu.CompilerParams(
        dimension_semantics=("arbitrary",),   # streaming column stats -> sequential
        vmem_limit_bytes=vmem_limit)

    def build(single_buffer_text):
        if single_buffer_text:
            # Resident operand, fetched exactly once: single-buffer it so the
            # (B, d) text block only costs one VMEM copy.
            text_spec = pl.BlockSpec((b, d), lambda i: (0, 0),
                                     pipeline_mode=pl.Buffered(1))
        else:
            text_spec = pl.BlockSpec((b, d), lambda i: (0, 0))
        return pl.pallas_call(
            _clip_loss_kernel,
            out_shape=out_shape,
            grid=(n_tiles,),
            in_specs=[
                pl.BlockSpec(memory_space=pltpu.MemorySpace.SMEM),  # logit_scale
                pl.BlockSpec((tq, d), lambda i: (i, 0)),            # gnn row tile
                text_spec,                                          # resident text
            ],
            out_specs=out_specs,
            scratch_shapes=scratch_shapes,
            compiler_params=compiler_params,
        )

    try:
        loss, acc = build(True)(scale, g, t)
    except Exception:
        # pl.Buffered(1) not supported on this jax version: retry 2-deep.
        loss, acc = build(False)(scale, g, t)
    return loss[0, 0], acc[0, 0]


def _reference(gnn, text, scale):
    g = gnn.astype(jnp.float32)
    t = text.astype(jnp.float32)
    l1 = scale * g @ t.T
    l2 = scale * t @ g.T
    labels = jnp.arange(l1.shape[-1])

    def ce(logits):
        lse = jax.scipy.special.logsumexp(logits, axis=-1)
        diag = logits[jnp.arange(logits.shape[0]), labels]
        return jnp.mean(lse - diag)

    def acc(logits):
        return jnp.mean((jnp.argmax(logits, -1) == labels).astype(jnp.float32))

    return (ce(l1) + ce(l2)) / 2, (acc(l1) + acc(l2)) / 2


if __name__ == "__main__":
    def make_inputs(key, b, d):
        kg, kt = jax.random.split(key)
        g = jax.random.normal(kg, (b, d), dtype=jnp.float32)
        t = jax.random.normal(kt, (b, d), dtype=jnp.float32)
        g = g / jnp.linalg.norm(g, axis=-1, keepdims=True)
        t = t / jnp.linalg.norm(t, axis=-1, keepdims=True)
        return g, t

    logit_scale = jnp.float32(np.exp(np.log(1.0 / 0.07)))

    # 1) Small single-tile shape, f32 MXU path: tight check vs the reference.
    g8, t8 = make_inputs(jax.random.PRNGKey(0), 8, 32)
    loss, acc = clip_loss(g8, t8, logit_scale, mxu_dtype=None)
    jax.block_until_ready((loss, acc))
    ref_loss, ref_acc = _reference(g8, t8, logit_scale)
    np.testing.assert_allclose(np.asarray(loss), np.asarray(ref_loss), rtol=1e-4, atol=1e-4)
    np.testing.assert_allclose(np.asarray(acc), np.asarray(ref_acc), rtol=0, atol=1e-6)

    # 2) Multi-tile f32 path: exercises the streaming column LSE merge exactly.
    g256, t256 = make_inputs(jax.random.PRNGKey(1), 256, 128)
    loss2, acc2 = clip_loss(g256, t256, logit_scale, tq=128, mxu_dtype=None)
    jax.block_until_ready((loss2, acc2))
    ref_loss2, ref_acc2 = _reference(g256, t256, logit_scale)
    np.testing.assert_allclose(np.asarray(loss2), np.asarray(ref_loss2), rtol=1e-4, atol=1e-4)
    # Accuracy compared loosely: argmax near-ties may resolve differently
    # between the MXU and the XLA reference matmul for random data.
    np.testing.assert_allclose(np.asarray(acc2), np.asarray(ref_acc2), rtol=0, atol=6e-3)

    # 3) Default bf16-MXU path (production config): loose loss tolerance for
    #    the bf16 input rounding.
    loss3, acc3 = clip_loss(g256, t256, logit_scale, tq=128)
    jax.block_until_ready((loss3, acc3))
    np.testing.assert_allclose(np.asarray(loss3), np.asarray(ref_loss2), rtol=2e-2, atol=2e-2)
    np.testing.assert_allclose(np.asarray(acc3), np.asarray(ref_acc2), rtol=0, atol=1.5e-2)

    print("KERNEL_OK")
</pallas_src>

<mosaic_0001>
module attributes {stable_mosaic.version = 11 : i64} {
  func.func @_clip_loss_kernel(%arg0: i32, %arg1: memref<1xf32, #tpu.memory_space<smem>>, %arg2: memref<8x32xf32, #tpu.memory_space<vmem>>, %arg3: memref<8x32xf32, #tpu.memory_space<vmem>>, %arg4: memref<1x1xf32, #tpu.memory_space<vmem>>, %arg5: memref<1x1xf32, #tpu.memory_space<vmem>>, %arg6: memref<1x8xf32, #tpu.memory_space<vmem>>, %arg7: memref<1x8xf32, #tpu.memory_space<vmem>>, %arg8: memref<1x8xf32, #tpu.memory_space<vmem>>, %arg9: memref<1x1xf32, #tpu.memory_space<vmem>>, %arg10: memref<1x1xf32, #tpu.memory_space<vmem>>) attributes {dimension_semantics = [#tpu.dimension_semantics<arbitrary>], iteration_bounds = array<i64: 1>, scalar_prefetch = 0 : i64, scratch_operands = 5 : i64, tpu.core_type = #tpu.core_type<tc>, window_params = [{transform_indices = @transform_0, window_bounds = array<i64: 1>}, {transform_indices = @transform_1, window_bounds = array<i64: 8, 32>}, {pipeline_mode = #tpu.pipeline_mode<synchronous>, transform_indices = @transform_2, window_bounds = array<i64: 8, 32>}, {pipeline_mode = #tpu.pipeline_mode<synchronous>, transform_indices = @transform_3, window_bounds = array<i64: 1, 1>}, {pipeline_mode = #tpu.pipeline_mode<synchronous>, transform_indices = @transform_4, window_bounds = array<i64: 1, 1>}]} {
    %c0 = arith.constant 0 : index
    %0 = memref.load %arg1[%c0] : memref<1xf32, #tpu.memory_space<smem>>
    %c0_0 = arith.constant 0 : index
    %c0_1 = arith.constant 0 : index
    %1 = vector.load %arg2[%c0_0, %c0_1] : memref<8x32xf32, #tpu.memory_space<vmem>>, vector<8x32xf32>
    %2 = vector.broadcast %0 : f32 to vector<8x32xf32>
    %3 = arith.mulf %2, %1 : vector<8x32xf32>
    %c0_2 = arith.constant 0 : index
    %c0_3 = arith.constant 0 : index
    %4 = vector.load %arg3[%c0_2, %c0_3] : memref<8x32xf32, #tpu.memory_space<vmem>>, vector<8x32xf32>
    %cst = arith.constant dense<0.000000e+00> : vector<8x8xf32>
    %5 = tpu.matmul %3, %4, %cst {dimension_numbers = #tpu.dot_dimension_numbers<[1], [1], [0], [0], [0, 0, 1, 0], [], []>} : vector<8x32xf32>, vector<8x32xf32>, vector<8x8xf32> -> vector<8x8xf32>
    %c8_i32 = arith.constant 8 : i32
    %6 = arith.muli %arg0, %c8_i32 : i32
    %7 = tpu.iota {dimensions = array<i32: 0>} : vector<8x1xi32>
    %8 = vector.broadcast %6 : i32 to vector<8x1xi32>
    %9 = arith.addi %8, %7 : vector<8x1xi32>
    %10 = tpu.iota {dimensions = array<i32: 1>} : vector<8x8xi32>
    %11 = vector.broadcast %9 : vector<8x1xi32> to vector<8x8xi32>
    %12 = arith.cmpi eq, %10, %11 : vector<8x8xi32>
    %cst_4 = arith.constant 0.000000e+00 : f32
    %13 = vector.broadcast %cst_4 : f32 to vector<8x8xf32>
    %14 = arith.select %12, %5, %13 : vector<8x8xi1>, vector<8x8xf32>
    %cst_5 = arith.constant dense<0.000000e+00> : vector<8xf32>
    %15 = vector.multi_reduction <add>, %14, %cst_5 [1] : vector<8x8xf32> to vector<8xf32>
    %16 = vector.shape_cast %15 : vector<8xf32> to vector<8x1xf32>
    %cst_6 = arith.constant dense<0.000000e+00> : vector<8xf32>
    %17 = vector.multi_reduction <add>, %14, %cst_6 [0] : vector<8x8xf32> to vector<8xf32>
    %18 = vector.shape_cast %17 : vector<8xf32> to vector<1x8xf32>
    %cst_7 = arith.constant dense<0xFF800000> : vector<8xf32>
    %19 = vector.multi_reduction <maximumf>, %5, %cst_7 [1] : vector<8x8xf32> to vector<8xf32>
    %20 = vector.shape_cast %19 : vector<8xf32> to vector<8x1xf32>
    %21 = vector.broadcast %20 : vector<8x1xf32> to vector<8x8xf32>
    %22 = arith.subf %5, %21 : vector<8x8xf32>
    %23 = math.exp %22 : vector<8x8xf32>
    %cst_8 = arith.constant dense<0.000000e+00> : vector<8xf32>
    %24 = vector.multi_reduction <add>, %23, %cst_8 [1] : vector<8x8xf32> to vector<8xf32>
    %25 = vector.shape_cast %24 : vector<8xf32> to vector<8x1xf32>
    %26 = math.log %25 : vector<8x1xf32>
    %27 = arith.addf %20, %26 : vector<8x1xf32>
    %28 = arith.subf %27, %16 : vector<8x1xf32>
    %29 = vector.shape_cast %28 : vector<8x1xf32> to vector<1x8x1xf32>
    %cst_9 = arith.constant dense<0.000000e+00> : vector<1xf32>
    %30 = vector.multi_reduction <add>, %29, %cst_9 [1, 2] : vector<1x8x1xf32> to vector<1xf32>
    %31 = vector.shape_cast %30 : vector<1xf32> to vector<1x1x1xf32>
    %32 = vector.extract %31[0, 0, 0] : f32 from vector<1x1x1xf32>
    %33 = vector.broadcast %32 : f32 to vector<1x1xf32>
    %34 = arith.cmpf oge, %16, %20 : vector<8x1xf32>
    %35 = arith.extui %34 : vector<8x1xi1> to vector<8x1xi32>
    %36 = arith.sitofp %35 : vector<8x1xi32> to vector<8x1xf32>
    %37 = vector.shape_cast %36 : vector<8x1xf32> to vector<1x8x1xf32>
    %cst_10 = arith.constant dense<0.000000e+00> : vector<1xf32>
    %38 = vector.multi_reduction <add>, %37, %cst_10 [1, 2] : vector<1x8x1xf32> to vector<1xf32>
    %39 = vector.shape_cast %38 : vector<1xf32> to vector<1x1x1xf32>
    %40 = vector.extract %39[0, 0, 0] : f32 from vector<1x1x1xf32>
    %41 = vector.broadcast %40 : f32 to vector<1x1xf32>
    %cst_11 = arith.constant dense<0xFF800000> : vector<8xf32>
    %42 = vector.multi_reduction <maximumf>, %5, %cst_11 [0] : vector<8x8xf32> to vector<8xf32>
    %43 = vector.shape_cast %42 : vector<8xf32> to vector<1x8xf32>
    %44 = vector.broadcast %43 : vector<1x8xf32> to vector<8x8xf32>
    %45 = arith.subf %5, %44 : vector<8x8xf32>
    %46 = math.exp %45 : vector<8x8xf32>
    %cst_12 = arith.constant dense<0.000000e+00> : vector<8xf32>
    %47 = vector.multi_reduction <add>, %46, %cst_12 [0] : vector<8x8xf32> to vector<8xf32>
    %48 = vector.shape_cast %47 : vector<8xf32> to vector<1x8xf32>
    %c0_i32 = arith.constant 0 : i32
    %49 = arith.cmpi eq, %arg0, %c0_i32 : i32
    %50 = arith.extui %49 : i1 to i32
    %c0_i32_13 = arith.constant 0 : i32
    %51 = arith.cmpi ne, %50, %c0_i32_13 : i32
    scf.if %51 {
      %c0_18 = arith.constant 0 : index
      %c0_19 = arith.constant 0 : index
      %58 = vector.load %arg6[%c0_18, %c0_19] : memref<1x8xf32, #tpu.memory_space<vmem>>, vector<1x8xf32>
      tpu.vector_store %arg6[%c0_18, %c0_19], %43 {strides = array<i32>} : memref<1x8xf32, #tpu.memory_space<vmem>>, vector<1x8xf32>,
      %c0_20 = arith.constant 0 : index
      %c0_21 = arith.constant 0 : index
      %59 = vector.load %arg7[%c0_20, %c0_21] : memref<1x8xf32, #tpu.memory_space<vmem>>, vector<1x8xf32>
      tpu.vector_store %arg7[%c0_20, %c0_21], %48 {strides = array<i32>} : memref<1x8xf32, #tpu.memory_space<vmem>>, vector<1x8xf32>,
      %c0_22 = arith.constant 0 : index
      %c0_23 = arith.constant 0 : index
      %60 = vector.load %arg8[%c0_22, %c0_23] : memref<1x8xf32, #tpu.memory_space<vmem>>, vector<1x8xf32>
      tpu.vector_store %arg8[%c0_22, %c0_23], %18 {strides = array<i32>} : memref<1x8xf32, #tpu.memory_space<vmem>>, vector<1x8xf32>,
      %c0_24 = arith.constant 0 : index
      %c0_25 = arith.constant 0 : index
      %61 = vector.load %arg9[%c0_24, %c0_25] : memref<1x1xf32, #tpu.memory_space<vmem>>, vector<1x1xf32>
      tpu.vector_store %arg9[%c0_24, %c0_25], %33 {strides = array<i32>} : memref<1x1xf32, #tpu.memory_space<vmem>>, vector<1x1xf32>,
      %c0_26 = arith.constant 0 : index
      %c0_27 = arith.constant 0 : index
      %62 = vector.load %arg10[%c0_26, %c0_27] : memref<1x1xf32, #tpu.memory_space<vmem>>, vector<1x1xf32>
      tpu.vector_store %arg10[%c0_26, %c0_27], %41 {strides = array<i32>} : memref<1x1xf32, #tpu.memory_space<vmem>>, vector<1x1xf32>,
    } else {
    }
    %c0_i32_14 = arith.constant 0 : i32
    %52 = arith.cmpi sgt, %arg0, %c0_i32_14 : i32
    %53 = arith.extui %52 : i1 to i32
    %c0_i32_15 = arith.constant 0 : i32
    %54 = arith.cmpi ne, %53, %c0_i32_15 : i32
    scf.if %54 {
      %c0_18 = arith.constant 0 : index
      %c0_19 = arith.constant 0 : index
      %58 = vector.load %arg6[%c0_18, %c0_19] : memref<1x8xf32, #tpu.memory_space<vmem>>, vector<1x8xf32>
      %59 = arith.maximumf %58, %43 : vector<1x8xf32>
      %c0_20 = arith.constant 0 : index
      %c0_21 = arith.constant 0 : index
      %60 = vector.load %arg7[%c0_20, %c0_21] : memref<1x8xf32, #tpu.memory_space<vmem>>, vector<1x8xf32>
      %61 = arith.subf %58, %59 : vector<1x8xf32>
      %62 = math.exp %61 : vector<1x8xf32>
      %63 = arith.mulf %60, %62 : vector<1x8xf32>
      %64 = arith.subf %43, %59 : vector<1x8xf32>
      %65 = math.exp %64 : vector<1x8xf32>
      %66 = arith.mulf %48, %65 : vector<1x8xf32>
      %67 = arith.addf %63, %66 : vector<1x8xf32>
      %c0_22 = arith.constant 0 : index
      %c0_23 = arith.constant 0 : index
      %68 = vector.load %arg7[%c0_22, %c0_23] : memref<1x8xf32, #tpu.memory_space<vmem>>, vector<1x8xf32>
      tpu.vector_store %arg7[%c0_22, %c0_23], %67 {strides = array<i32>} : memref<1x8xf32, #tpu.memory_space<vmem>>, vector<1x8xf32>,
      %c0_24 = arith.constant 0 : index
      %c0_25 = arith.constant 0 : index
      %69 = vector.load %arg6[%c0_24, %c0_25] : memref<1x8xf32, #tpu.memory_space<vmem>>, vector<1x8xf32>
      tpu.vector_store %arg6[%c0_24, %c0_25], %59 {strides = array<i32>} : memref<1x8xf32, #tpu.memory_space<vmem>>, vector<1x8xf32>,
      %c0_26 = arith.constant 0 : index
      %c0_27 = arith.constant 0 : index
      %70 = vector.load %arg8[%c0_26, %c0_27] : memref<1x8xf32, #tpu.memory_space<vmem>>, vector<1x8xf32>
      %71 = arith.addf %70, %18 : vector<1x8xf32>
      %c0_28 = arith.constant 0 : index
      %c0_29 = arith.constant 0 : index
      %72 = vector.load %arg8[%c0_28, %c0_29] : memref<1x8xf32, #tpu.memory_space<vmem>>, vector<1x8xf32>
      tpu.vector_store %arg8[%c0_28, %c0_29], %71 {strides = array<i32>} : memref<1x8xf32, #tpu.memory_space<vmem>>, vector<1x8xf32>,
      %c0_30 = arith.constant 0 : index
      %c0_31 = arith.constant 0 : index
      %73 = vector.load %arg9[%c0_30, %c0_31] : memref<1x1xf32, #tpu.memory_space<vmem>>, vector<1x1xf32>
      %74 = arith.addf %73, %33 : vector<1x1xf32>
      %c0_32 = arith.constant 0 : index
      %c0_33 = arith.constant 0 : index
      %75 = vector.load %arg9[%c0_32, %c0_33] : memref<1x1xf32, #tpu.memory_space<vmem>>, vector<1x1xf32>
      tpu.vector_store %arg9[%c0_32, %c0_33], %74 {strides = array<i32>} : memref<1x1xf32, #tpu.memory_space<vmem>>, vector<1x1xf32>,
      %c0_34 = arith.constant 0 : index
      %c0_35 = arith.constant 0 : index
      %76 = vector.load %arg10[%c0_34, %c0_35] : memref<1x1xf32, #tpu.memory_space<vmem>>, vector<1x1xf32>
      %77 = arith.addf %76, %41 : vector<1x1xf32>
      %c0_36 = arith.constant 0 : index
      %c0_37 = arith.constant 0 : index
      %78 = vector.load %arg10[%c0_36, %c0_37] : memref<1x1xf32, #tpu.memory_space<vmem>>, vector<1x1xf32>
      tpu.vector_store %arg10[%c0_36, %c0_37], %77 {strides = array<i32>} : memref<1x1xf32, #tpu.memory_space<vmem>>, vector<1x1xf32>,
    } else {
    }
    %c0_i32_16 = arith.constant 0 : i32
    %55 = arith.cmpi eq, %arg0, %c0_i32_16 : i32
    %56 = arith.extui %55 : i1 to i32
    %c0_i32_17 = arith.constant 0 : i32
    %57 = arith.cmpi ne, %56, %c0_i32_17 : i32
    scf.if %57 {
      %c0_18 = arith.constant 0 : index
      %c0_19 = arith.constant 0 : index
      %58 = vector.load %arg6[%c0_18, %c0_19] : memref<1x8xf32, #tpu.memory_space<vmem>>, vector<1x8xf32>
      %c0_20 = arith.constant 0 : index
      %c0_21 = arith.constant 0 : index
      %59 = vector.load %arg7[%c0_20, %c0_21] : memref<1x8xf32, #tpu.memory_space<vmem>>, vector<1x8xf32>
      %60 = math.log %59 : vector<1x8xf32>
      %61 = arith.addf %58, %60 : vector<1x8xf32>
      %c0_22 = arith.constant 0 : index
      %c0_23 = arith.constant 0 : index
      %62 = vector.load %arg8[%c0_22, %c0_23] : memref<1x8xf32, #tpu.memory_space<vmem>>, vector<1x8xf32>
      %63 = arith.subf %61, %62 : vector<1x8xf32>
      %64 = vector.shape_cast %63 : vector<1x8xf32> to vector<1x1x8xf32>
      %cst_24 = arith.constant dense<0.000000e+00> : vector<1xf32>
      %65 = vector.multi_reduction <add>, %64, %cst_24 [1, 2] : vector<1x1x8xf32> to vector<1xf32>
      %66 = vector.shape_cast %65 : vector<1xf32> to vector<1x1x1xf32>
      %67 = vector.extract %66[0, 0, 0] : f32 from vector<1x1x1xf32>
      %68 = vector.broadcast %67 : f32 to vector<1x1xf32>
      %c0_25 = arith.constant 0 : index
      %c0_26 = arith.constant 0 : index
      %69 = vector.load %arg6[%c0_25, %c0_26] : memref<1x8xf32, #tpu.memory_space<vmem>>, vector<1x8xf32>
      %70 = arith.cmpf oge, %62, %69 : vector<1x8xf32>
      %71 = arith.extui %70 : vector<1x8xi1> to vector<1x8xi32>
      %72 = arith.sitofp %71 : vector<1x8xi32> to vector<1x8xf32>
      %73 = vector.shape_cast %72 : vector<1x8xf32> to vector<1x1x8xf32>
      %cst_27 = arith.constant dense<0.000000e+00> : vector<1xf32>
      %74 = vector.multi_reduction <add>, %73, %cst_27 [1, 2] : vector<1x1x8xf32> to vector<1xf32>
      %75 = vector.shape_cast %74 : vector<1xf32> to vector<1x1x1xf32>
      %76 = vector.extract %75[0, 0, 0] : f32 from vector<1x1x1xf32>
      %77 = vector.broadcast %76 : f32 to vector<1x1xf32>
      %c0_28 = arith.constant 0 : index
      %c0_29 = arith.constant 0 : index
      %78 = vector.load %arg9[%c0_28, %c0_29] : memref<1x1xf32, #tpu.memory_space<vmem>>, vector<1x1xf32>
      %79 = arith.addf %78, %68 : vector<1x1xf32>
      %cst_30 = arith.constant 6.250000e-02 : f32
      %80 = vector.broadcast %cst_30 : f32 to vector<1x1xf32>
      %81 = arith.mulf %79, %80 : vector<1x1xf32>
      %c0_31 = arith.constant 0 : index
      %c0_32 = arith.constant 0 : index
      %82 = vector.load %arg4[%c0_31, %c0_32] : memref<1x1xf32, #tpu.memory_space<vmem>>, vector<1x1xf32>
      tpu.vector_store %arg4[%c0_31, %c0_32], %81 {strides = array<i32>} : memref<1x1xf32, #tpu.memory_space<vmem>>, vector<1x1xf32>,
      %c0_33 = arith.constant 0 : index
      %c0_34 = arith.constant 0 : index
      %83 = vector.load %arg10[%c0_33, %c0_34] : memref<1x1xf32, #tpu.memory_space<vmem>>, vector<1x1xf32>
      %84 = arith.addf %83, %77 : vector<1x1xf32>
      %cst_35 = arith.constant 6.250000e-02 : f32
      %85 = vector.broadcast %cst_35 : f32 to vector<1x1xf32>
      %86 = arith.mulf %84, %85 : vector<1x1xf32>
      %c0_36 = arith.constant 0 : index
      %c0_37 = arith.constant 0 : index
      %87 = vector.load %arg5[%c0_36, %c0_37] : memref<1x1xf32, #tpu.memory_space<vmem>>, vector<1x1xf32>
      tpu.vector_store %arg5[%c0_36, %c0_37], %86 {strides = array<i32>} : memref<1x1xf32, #tpu.memory_space<vmem>>, vector<1x1xf32>,
    } else {
    }
    return
  }
  func.func @transform_0(%arg0: i32) -> i32 {
    %c0_i32 = arith.constant 0 : i32
    %c0_i32_0 = arith.constant 0 : i32
    return %c0_i32 : i32
  }
  func.func @transform_1(%arg0: i32) -> (i32, i32) {
    %c0_i32 = arith.constant 0 : i32
    %c0_i32_0 = arith.constant 0 : i32
    return %arg0, %c0_i32 : i32, i32
  }
  func.func @transform_2(%arg0: i32) -> (i32, i32) {
    %c0_i32 = arith.constant 0 : i32
    %c0_i32_0 = arith.constant 0 : i32
    %c0_i32_1 = arith.constant 0 : i32
    return %c0_i32, %c0_i32_0 : i32, i32
  }
  func.func @transform_3(%arg0: i32) -> (i32, i32) {
    %c0_i32 = arith.constant 0 : i32
    %c0_i32_0 = arith.constant 0 : i32
    %c0_i32_1 = arith.constant 0 : i32
    return %c0_i32, %c0_i32_0 : i32, i32
  }
  func.func @transform_4(%arg0: i32) -> (i32, i32) {
    %c0_i32 = arith.constant 0 : i32
    %c0_i32_0 = arith.constant 0 : i32
    %c0_i32_1 = arith.constant 0 : i32
    return %c0_i32, %c0_i32_0 : i32, i32
  }
}

module attributes {stable_mosaic.version = 11 : i64} {
  func.func @_clip_loss_kernel(%arg0: i32, %arg1: memref<1xf32, #tpu.memory_space<smem>>, %arg2: memref<8x32xf32, #tpu.memory_space<vmem>>, %arg3: memref<8x32xf32, #tpu.memory_space<vmem>>, %arg4: memref<1x1xf32, #tpu.memory_space<vmem>>, %arg5: memref<1x1xf32, #tpu.memory_space<vmem>>, %arg6: memref<1x8xf32, #tpu.memory_space<vmem>>, %arg7: memref<1x8xf32, #tpu.memory_space<vmem>>, %arg8: memref<1x8xf32, #tpu.memory_space<vmem>>, %arg9: memref<1x1xf32, #tpu.memory_space<vmem>>, %arg10: memref<1x1xf32, #tpu.memory_space<vmem>>) attributes {dimension_semantics = [#tpu.dimension_semantics<arbitrary>], iteration_bounds = array<i64: 1>, scalar_prefetch = 0 : i64, scratch_operands = 5 : i64, tpu.core_type = #tpu.core_type<tc>, window_params = [{transform_indices = @transform_0, window_bounds = array<i64: 1>}, {transform_indices = @transform_1, window_bounds = array<i64: 8, 32>}, {pipeline_mode = #tpu.pipeline_mode<synchronous>, transform_indices = @transform_2, window_bounds = array<i64: 8, 32>}, {pipeline_mode = #tpu.pipeline_mode<synchronous>, transform_indices = @transform_3, window_bounds = array<i64: 1, 1>}, {pipeline_mode = #tpu.pipeline_mode<synchronous>, transform_indices = @transform_4, window_bounds = array<i64: 1, 1>}]} {
    %c0 = arith.constant 0 : index
    %0 = memref.load %arg1[%c0] : memref<1xf32, #tpu.memory_space<smem>>
    %c0_0 = arith.constant 0 : index
    %c0_1 = arith.constant 0 : index
    %1 = vector.load %arg2[%c0_0, %c0_1] : memref<8x32xf32, #tpu.memory_space<vmem>>, vector<8x32xf32>
    %2 = vector.broadcast %0 : f32 to vector<8x32xf32>
    %3 = arith.mulf %2, %1 : vector<8x32xf32>
    %c0_2 = arith.constant 0 : index
    %c0_3 = arith.constant 0 : index
    %4 = vector.load %arg3[%c0_2, %c0_3] : memref<8x32xf32, #tpu.memory_space<vmem>>, vector<8x32xf32>
    %cst = arith.constant dense<0.000000e+00> : vector<8x8xf32>
    %5 = tpu.matmul %3, %4, %cst {dimension_numbers = #tpu.dot_dimension_numbers<[1], [1], [0], [0], [0, 0, 1, 0], [], []>} : vector<8x32xf32>, vector<8x32xf32>, vector<8x8xf32> -> vector<8x8xf32>
    %c8_i32 = arith.constant 8 : i32
    %6 = arith.muli %arg0, %c8_i32 : i32
    %7 = tpu.iota {dimensions = array<i32: 0>} : vector<8x1xi32>
    %8 = vector.broadcast %6 : i32 to vector<8x1xi32>
    %9 = arith.addi %8, %7 : vector<8x1xi32>
    %10 = tpu.iota {dimensions = array<i32: 1>} : vector<8x8xi32>
    %11 = vector.broadcast %9 : vector<8x1xi32> to vector<8x8xi32>
    %12 = arith.cmpi eq, %10, %11 : vector<8x8xi32>
    %cst_4 = arith.constant 0.000000e+00 : f32
    %13 = vector.broadcast %cst_4 : f32 to vector<8x8xf32>
    %14 = arith.select %12, %5, %13 : vector<8x8xi1>, vector<8x8xf32>
    %cst_5 = arith.constant dense<0.000000e+00> : vector<8xf32>
    %15 = vector.multi_reduction <add>, %14, %cst_5 [1] : vector<8x8xf32> to vector<8xf32>
    %16 = vector.shape_cast %15 : vector<8xf32> to vector<8x1xf32>
    %cst_6 = arith.constant dense<0.000000e+00> : vector<8xf32>
    %17 = vector.multi_reduction <add>, %14, %cst_6 [0] : vector<8x8xf32> to vector<8xf32>
    %18 = vector.shape_cast %17 : vector<8xf32> to vector<1x8xf32>
    %cst_7 = arith.constant dense<0xFF800000> : vector<8xf32>
    %19 = vector.multi_reduction <maximumf>, %5, %cst_7 [1] : vector<8x8xf32> to vector<8xf32>
    %20 = vector.shape_cast %19 : vector<8xf32> to vector<8x1xf32>
    %21 = vector.broadcast %20 : vector<8x1xf32> to vector<8x8xf32>
    %22 = arith.subf %5, %21 : vector<8x8xf32>
    %23 = math.exp %22 : vector<8x8xf32>
    %cst_8 = arith.constant dense<0.000000e+00> : vector<8xf32>
    %24 = vector.multi_reduction <add>, %23, %cst_8 [1] : vector<8x8xf32> to vector<8xf32>
    %25 = vector.shape_cast %24 : vector<8xf32> to vector<8x1xf32>
    %26 = math.log %25 : vector<8x1xf32>
    %27 = arith.addf %20, %26 : vector<8x1xf32>
    %28 = arith.subf %27, %16 : vector<8x1xf32>
    %29 = vector.shape_cast %28 : vector<8x1xf32> to vector<1x8x1xf32>
    %cst_9 = arith.constant dense<0.000000e+00> : vector<1xf32>
    %30 = vector.multi_reduction <add>, %29, %cst_9 [1, 2] : vector<1x8x1xf32> to vector<1xf32>
    %31 = vector.shape_cast %30 : vector<1xf32> to vector<1x1x1xf32>
    %32 = vector.extract %31[0, 0, 0] : f32 from vector<1x1x1xf32>
    %33 = vector.broadcast %32 : f32 to vector<1x1xf32>
    %34 = arith.cmpf oge, %16, %20 : vector<8x1xf32>
    %35 = arith.extui %34 : vector<8x1xi1> to vector<8x1xi32>
    %36 = arith.sitofp %35 : vector<8x1xi32> to vector<8x1xf32>
    %37 = vector.shape_cast %36 : vector<8x1xf32> to vector<1x8x1xf32>
    %cst_10 = arith.constant dense<0.000000e+00> : vector<1xf32>
    %38 = vector.multi_reduction <add>, %37, %cst_10 [1, 2] : vector<1x8x1xf32> to vector<1xf32>
    %39 = vector.shape_cast %38 : vector<1xf32> to vector<1x1x1xf32>
    %40 = vector.extract %39[0, 0, 0] : f32 from vector<1x1x1xf32>
    %41 = vector.broadcast %40 : f32 to vector<1x1xf32>
    %cst_11 = arith.constant dense<0xFF800000> : vector<8xf32>
    %42 = vector.multi_reduction <maximumf>, %5, %cst_11 [0] : vector<8x8xf32> to vector<8xf32>
    %43 = vector.shape_cast %42 : vector<8xf32> to vector<1x8xf32>
    %44 = vector.broadcast %43 : vector<1x8xf32> to vector<8x8xf32>
    %45 = arith.subf %5, %44 : vector<8x8xf32>
    %46 = math.exp %45 : vector<8x8xf32>
    %cst_12 = arith.constant dense<0.000000e+00> : vector<8xf32>
    %47 = vector.multi_reduction <add>, %46, %cst_12 [0] : vector<8x8xf32> to vector<8xf32>
    %48 = vector.shape_cast %47 : vector<8xf32> to vector<1x8xf32>
    %c0_i32 = arith.constant 0 : i32
    %49 = arith.cmpi eq, %arg0, %c0_i32 : i32
    %50 = arith.extui %49 : i1 to i32
    %c0_i32_13 = arith.constant 0 : i32
    %51 = arith.cmpi ne, %50, %c0_i32_13 : i32
    scf.if %51 {
      %c0_18 = arith.constant 0 : index
      %c0_19 = arith.constant 0 : index
      %58 = vector.load %arg6[%c0_18, %c0_19] : memref<1x8xf32, #tpu.memory_space<vmem>>, vector<1x8xf32>
      tpu.vector_store %arg6[%c0_18, %c0_19], %43 {strides = array<i32>} : memref<1x8xf32, #tpu.memory_space<vmem>>, vector<1x8xf32>,
      %c0_20 = arith.constant 0 : index
      %c0_21 = arith.constant 0 : index
      %59 = vector.load %arg7[%c0_20, %c0_21] : memref<1x8xf32, #tpu.memory_space<vmem>>, vector<1x8xf32>
      tpu.vector_store %arg7[%c0_20, %c0_21], %48 {strides = array<i32>} : memref<1x8xf32, #tpu.memory_space<vmem>>, vector<1x8xf32>,
      %c0_22 = arith.constant 0 : index
      %c0_23 = arith.constant 0 : index
      %60 = vector.load %arg8[%c0_22, %c0_23] : memref<1x8xf32, #tpu.memory_space<vmem>>, vector<1x8xf32>
      tpu.vector_store %arg8[%c0_22, %c0_23], %18 {strides = array<i32>} : memref<1x8xf32, #tpu.memory_space<vmem>>, vector<1x8xf32>,
      %c0_24 = arith.constant 0 : index
      %c0_25 = arith.constant 0 : index
      %61 = vector.load %arg9[%c0_24, %c0_25] : memref<1x1xf32, #tpu.memory_space<vmem>>, vector<1x1xf32>
      tpu.vector_store %arg9[%c0_24, %c0_25], %33 {strides = array<i32>} : memref<1x1xf32, #tpu.memory_space<vmem>>, vector<1x1xf32>,
      %c0_26 = arith.constant 0 : index
      %c0_27 = arith.constant 0 : index
      %62 = vector.load %arg10[%c0_26, %c0_27] : memref<1x1xf32, #tpu.memory_space<vmem>>, vector<1x1xf32>
      tpu.vector_store %arg10[%c0_26, %c0_27], %41 {strides = array<i32>} : memref<1x1xf32, #tpu.memory_space<vmem>>, vector<1x1xf32>,
    } else {
    }
    %c0_i32_14 = arith.constant 0 : i32
    %52 = arith.cmpi sgt, %arg0, %c0_i32_14 : i32
    %53 = arith.extui %52 : i1 to i32
    %c0_i32_15 = arith.constant 0 : i32
    %54 = arith.cmpi ne, %53, %c0_i32_15 : i32
    scf.if %54 {
      %c0_18 = arith.constant 0 : index
      %c0_19 = arith.constant 0 : index
      %58 = vector.load %arg6[%c0_18, %c0_19] : memref<1x8xf32, #tpu.memory_space<vmem>>, vector<1x8xf32>
      %59 = arith.maximumf %58, %43 : vector<1x8xf32>
      %c0_20 = arith.constant 0 : index
      %c0_21 = arith.constant 0 : index
      %60 = vector.load %arg7[%c0_20, %c0_21] : memref<1x8xf32, #tpu.memory_space<vmem>>, vector<1x8xf32>
      %61 = arith.subf %58, %59 : vector<1x8xf32>
      %62 = math.exp %61 : vector<1x8xf32>
      %63 = arith.mulf %60, %62 : vector<1x8xf32>
      %64 = arith.subf %43, %59 : vector<1x8xf32>
      %65 = math.exp %64 : vector<1x8xf32>
      %66 = arith.mulf %48, %65 : vector<1x8xf32>
      %67 = arith.addf %63, %66 : vector<1x8xf32>
      %c0_22 = arith.constant 0 : index
      %c0_23 = arith.constant 0 : index
      %68 = vector.load %arg7[%c0_22, %c0_23] : memref<1x8xf32, #tpu.memory_space<vmem>>, vector<1x8xf32>
      tpu.vector_store %arg7[%c0_22, %c0_23], %67 {strides = array<i32>} : memref<1x8xf32, #tpu.memory_space<vmem>>, vector<1x8xf32>,
      %c0_24 = arith.constant 0 : index
      %c0_25 = arith.constant 0 : index
      %69 = vector.load %arg6[%c0_24, %c0_25] : memref<1x8xf32, #tpu.memory_space<vmem>>, vector<1x8xf32>
      tpu.vector_store %arg6[%c0_24, %c0_25], %59 {strides = array<i32>} : memref<1x8xf32, #tpu.memory_space<vmem>>, vector<1x8xf32>,
      %c0_26 = arith.constant 0 : index
      %c0_27 = arith.constant 0 : index
      %70 = vector.load %arg8[%c0_26, %c0_27] : memref<1x8xf32, #tpu.memory_space<vmem>>, vector<1x8xf32>
      %71 = arith.addf %70, %18 : vector<1x8xf32>
      %c0_28 = arith.constant 0 : index
      %c0_29 = arith.constant 0 : index
      %72 = vector.load %arg8[%c0_28, %c0_29] : memref<1x8xf32, #tpu.memory_space<vmem>>, vector<1x8xf32>
      tpu.vector_store %arg8[%c0_28, %c0_29], %71 {strides = array<i32>} : memref<1x8xf32, #tpu.memory_space<vmem>>, vector<1x8xf32>,
      %c0_30 = arith.constant 0 : index
      %c0_31 = arith.constant 0 : index
      %73 = vector.load %arg9[%c0_30, %c0_31] : memref<1x1xf32, #tpu.memory_space<vmem>>, vector<1x1xf32>
      %74 = arith.addf %73, %33 : vector<1x1xf32>
      %c0_32 = arith.constant 0 : index
      %c0_33 = arith.constant 0 : index
      %75 = vector.load %arg9[%c0_32, %c0_33] : memref<1x1xf32, #tpu.memory_space<vmem>>, vector<1x1xf32>
      tpu.vector_store %arg9[%c0_32, %c0_33], %74 {strides = array<i32>} : memref<1x1xf32, #tpu.memory_space<vmem>>, vector<1x1xf32>,
      %c0_34 = arith.constant 0 : index
      %c0_35 = arith.constant 0 : index
      %76 = vector.load %arg10[%c0_34, %c0_35] : memref<1x1xf32, #tpu.memory_space<vmem>>, vector<1x1xf32>
      %77 = arith.addf %76, %41 : vector<1x1xf32>
      %c0_36 = arith.constant 0 : index
      %c0_37 = arith.constant 0 : index
      %78 = vector.load %arg10[%c0_36, %c0_37] : memref<1x1xf32, #tpu.memory_space<vmem>>, vector<1x1xf32>
      tpu.vector_store %arg10[%c0_36, %c0_37], %77 {strides = array<i32>} : memref<1x1xf32, #tpu.memory_space<vmem>>, vector<1x1xf32>,
    } else {
    }
    %c0_i32_16 = arith.constant 0 : i32
    %55 = arith.cmpi eq, %arg0, %c0_i32_16 : i32
    %56 = arith.extui %55 : i1 to i32
    %c0_i32_17 = arith.constant 0 : i32
    %57 = arith.cmpi ne, %56, %c0_i32_17 : i32
    scf.if %57 {
      %c0_18 = arith.constant 0 : index
      %c0_19 = arith.constant 0 : index
      %58 = vector.load %arg6[%c0_18, %c0_19] : memref<1x8xf32, #tpu.memory_space<vmem>>, vector<1x8xf32>
      %c0_20 = arith.constant 0 : index
      %c0_21 = arith.constant 0 : index
      %59 = vector.load %arg7[%c0_20, %c0_21] : memref<1x8xf32, #tpu.memory_space<vmem>>, vector<1x8xf32>
      %60 = math.log %59 : vector<1x8xf32>
      %61 = arith.addf %58, %60 : vector<1x8xf32>
      %c0_22 = arith.constant 0 : index
      %c0_23 = arith.constant 0 : index
      %62 = vector.load %arg8[%c0_22, %c0_23] : memref<1x8xf32, #tpu.memory_space<vmem>>, vector<1x8xf32>
      %63 = arith.subf %61, %62 : vector<1x8xf32>
      %64 = vector.shape_cast %63 : vector<1x8xf32> to vector<1x1x8xf32>
      %cst_24 = arith.constant dense<0.000000e+00> : vector<1xf32>
      %65 = vector.multi_reduction <add>, %64, %cst_24 [1, 2] : vector<1x1x8xf32> to vector<1xf32>
      %66 = vector.shape_cast %65 : vector<1xf32> to vector<1x1x1xf32>
      %67 = vector.extract %66[0, 0, 0] : f32 from vector<1x1x1xf32>
      %68 = vector.broadcast %67 : f32 to vector<1x1xf32>
      %c0_25 = arith.constant 0 : index
      %c0_26 = arith.constant 0 : index
      %69 = vector.load %arg6[%c0_25, %c0_26] : memref<1x8xf32, #tpu.memory_space<vmem>>, vector<1x8xf32>
      %70 = arith.cmpf oge, %62, %69 : vector<1x8xf32>
      %71 = arith.extui %70 : vector<1x8xi1> to vector<1x8xi32>
      %72 = arith.sitofp %71 : vector<1x8xi32> to vector<1x8xf32>
      %73 = vector.shape_cast %72 : vector<1x8xf32> to vector<1x1x8xf32>
      %cst_27 = arith.constant dense<0.000000e+00> : vector<1xf32>
      %74 = vector.multi_reduction <add>, %73, %cst_27 [1, 2] : vector<1x1x8xf32> to vector<1xf32>
      %75 = vector.shape_cast %74 : vector<1xf32> to vector<1x1x1xf32>
      %76 = vector.extract %75[0, 0, 0] : f32 from vector<1x1x1xf32>
      %77 = vector.broadcast %76 : f32 to vector<1x1xf32>
      %c0_28 = arith.constant 0 : index
      %c0_29 = arith.constant 0 : index
      %78 = vector.load %arg9[%c0_28, %c0_29] : memref<1x1xf32, #tpu.memory_space<vmem>>, vector<1x1xf32>
      %79 = arith.addf %78, %68 : vector<1x1xf32>
      %cst_30 = arith.constant 6.250000e-02 : f32
      %80 = vector.broadcast %cst_30 : f32 to vector<1x1xf32>
      %81 = arith.mulf %79, %80 : vector<1x1xf32>
      %c0_31 = arith.constant 0 : index
      %c0_32 = arith.constant 0 : index
      %82 = vector.load %arg4[%c0_31, %c0_32] : memref<1x1xf32, #tpu.memory_space<vmem>>, vector<1x1xf32>
      tpu.vector_store %arg4[%c0_31, %c0_32], %81 {strides = array<i32>} : memref<1x1xf32, #tpu.memory_space<vmem>>, vector<1x1xf32>,
      %c0_33 = arith.constant 0 : index
      %c0_34 = arith.constant 0 : index
      %83 = vector.load %arg10[%c0_33, %c0_34] : memref<1x1xf32, #tpu.memory_space<vmem>>, vector<1x1xf32>
      %84 = arith.addf %83, %77 : vector<1x1xf32>
      %cst_35 = arith.constant 6.250000e-02 : f32
      %85 = vector.broadcast %cst_35 : f32 to vector<1x1xf32>
      %86 = arith.mulf %84, %85 : vector<1x1xf32>
      %c0_36 = arith.constant 0 : index
      %c0_37 = arith.constant 0 : index
      %87 = vector.load %arg5[%c0_36, %c0_37] : memref<1x1xf32, #tpu.memory_space<vmem>>, vector<1x1xf32>
      tpu.vector_store %arg5[%c0_36, %c0_37], %86 {strides = array<i32>} : memref<1x1xf32, #tpu.memory_space<vmem>>, vector<1x1xf32>,
    } else {
    }
    return
  }
  func.func @transform_0(%arg0: i32) -> i32 {
    %c0_i32 = arith.constant 0 : i32
    %c0_i32_0 = arith.constant 0 : i32
    return %c0_i32 : i32
  }
  func.func @transform_1(%arg0: i32) -> (i32, i32) {
    %c0_i32 = arith.constant 0 : i32
    %c0_i32_0 = arith.constant 0 : i32
    return %arg0, %c0_i32 : i32, i32
  }
  func.func @transform_2(%arg0: i32) -> (i32, i32) {
    %c0_i32 = arith.constant 0 : i32
    %c0_i32_0 = arith.constant 0 : i32
    %c0_i32_1 = arith.constant 0 : i32
    return %c0_i32, %c0_i32_0 : i32, i32
  }
  func.func @transform_3(%arg0: i32) -> (i32, i32) {
    %c0_i32 = arith.constant 0 : i32
    %c0_i32_0 = arith.constant 0 : i32
    %c0_i32_1 = arith.constant 0 : i32
    return %c0_i32, %c0_i32_0 : i32, i32
  }
  func.func @transform_4(%arg0: i32) -> (i32, i32) {
    %c0_i32 = arith.constant 0 : i32
    %c0_i32_0 = arith.constant 0 : i32
    %c0_i32_1 = arith.constant 0 : i32
    return %c0_i32, %c0_i32_0 : i32, i32
  }
}

</mosaic_0001>

<llo_original>
// kernel: tpu_custom_call.1
$region0: #{tpu_custom_call.1}
  #allocation0 [shape = 'u32[]', space=smem, size = 0x4, offset = 0x4, fixed_abs, tag = 'smem constant byte address 0x4 - core index']
  #allocation1 [shape = 'u32[144,128]{1,0:T(1,128)}', space=vmem, size = 0x12000, scoped, tag = 'internal scratch']
  #allocation2 [shape = 'f32[1,8]{1,0:T(1,128)}', space=vmem, size = 0x200, scoped, tag = 'scratch operand']
  #allocation3 [shape = 'f32[1,8]{1,0:T(1,128)}', space=vmem, size = 0x200, scoped, tag = 'scratch operand']
  #allocation4 [shape = 'f32[1,8]{1,0:T(1,128)}', space=vmem, size = 0x200, scoped, tag = 'scratch operand']
  #allocation5 [shape = 'f32[1,1]{1,0:T(1,128)}', space=vmem, size = 0x200, scoped, tag = 'scratch operand']
  #allocation6 [shape = 'f32[1,1]{1,0:T(1,128)}', space=vmem, size = 0x200, scoped, tag = 'scratch operand']
  #allocation7 [shape = 'f32[1]{0:T(128)S(6)}', space=smem, size = 0x200, scoped, tag = 'scoped memory for tpu_custom_call.1']
  %s0 = inlined_call_operand.<no memory space> [shape: f32[1], index: 0, kind: input, shape index: {}]
  %s1 = inlined_call_operand.hbm [shape: f32[8,32], index: 1, kind: input, shape index: {}]
  %s2 = inlined_call_operand.hbm [shape: f32[8,32], index: 2, kind: input, shape index: {}]
  %s3 = inlined_call_operand.hbm [shape: f32[1,1], index: 3, kind: output, shape index: {0}]
  %s4 = inlined_call_operand.hbm [shape: f32[1,1], index: 4, kind: output, shape index: {1}]
  %5 = xla_tuple %s3, %s4
  %s6 = sld [smem:[#allocation0]]
  $region50: #{tpu_custom_call.1} parent=0
    _
  %s8 = ssub.s32 1, %s6
  %s9 = scalar_select 0, %s8, %s6
  %10 = sst [smem:[#allocation7]] %s0
  $region1: #{tpu_custom_call.1} parent=0
    #allocation8 [shape = 'u8[4096]{0}', space=vmem, size = 0x1000, scoped, tag = 'input window, operand 1, single buffered']
    #allocation9 [shape = 's32[1]{0}', space=sflag, size = 0x4, scoped, tag = 'scoped memory for tpu_custom_call.1']
    #allocation10 [shape = 's32[1]{0}', space=sflag, size = 0x4, scoped, tag = 'scoped memory for tpu_custom_call.1']
    #allocation11 [shape = 'u8[4096]{0}', space=vmem, size = 0x1000, scoped, tag = 'input window, operand 2, single buffered']
    #allocation12 [shape = 's32[1]{0}', space=sflag, size = 0x4, scoped, tag = 'scoped memory for tpu_custom_call.1']
    #allocation13 [shape = 'u8[512]{0}', space=vmem, size = 0x400, scoped, tag = 'output window, operand 0, single buffered']
    #allocation14 [shape = 'u8[512]{0}', space=vmem, size = 0x400, scoped, tag = 'output window, operand 1, single buffered']
    #allocation15 [shape = 's32[1]{0}', space=sflag, size = 0x4, scoped, tag = 'scoped memory for tpu_custom_call.1']
    %11 = vsyncpa [#allocation9], 0
    %12 = vsyncpa [#allocation12], 0
    %13 = vsyncpa [#allocation10], 0
    %14 = vsyncpa [#allocation15], 0
    // Predicated region
    $region2: #{tpu_custom_call.1} parent=1 // pred_check
      _
    $region3: #{tpu_custom_call.1} parent=1 // pred_check_branch
      %16 = sbr.rel (0) target = $region5
    $region4: #{tpu_custom_call.1} parent=1 // pred_region
      _
    $region5: #{tpu_custom_call.1} parent=1 // pred_fallthru
      _
    // Predicated region
    $region6: #{tpu_custom_call.1} parent=1 // pred_check
      _
    $region7: #{tpu_custom_call.1} parent=1 // pred_check_branch
      %18 = sbr.rel (0) target = $region9
    $region8: #{tpu_custom_call.1} parent=1 // pred_region
      %s20 = ssub.s32 128, 128
      %21 = vsyncadd [#allocation9], %s20
      %s23 = sshll.u32 [#allocation8], 4
      %s24 = int_to_ptr.vmem [resolvable:$true] %s23
      %26 = dma.hbm_to_vmem [thread:$0]  %s1, 128, %s24, [#allocation9]
    $region9: #{tpu_custom_call.1} parent=1 // pred_fallthru
      _
    // Predicated region
    $region10: #{tpu_custom_call.1} parent=1 // pred_check
      _
    $region11: #{tpu_custom_call.1} parent=1 // pred_check_branch
      %28 = sbr.rel (0) target = $region13
    $region12: #{tpu_custom_call.1} parent=1 // pred_region
      %s30 = ssub.s32 128, 128
      %31 = vsyncadd [#allocation12], %s30
      %s33 = sshll.u32 [#allocation11], 4
      %s34 = int_to_ptr.vmem [resolvable:$true] %s33
      %36 = dma.hbm_to_vmem [thread:$0]  %s2, 128, %s34, [#allocation12]
    $region13: #{tpu_custom_call.1} parent=1 // pred_fallthru
      _
    // Predicated region
    $region14: #{tpu_custom_call.1} parent=1 // pred_check
      _
    $region15: #{tpu_custom_call.1} parent=1 // pred_check_branch
      %38 = sbr.rel (0) target = $region17
    $region16: #{tpu_custom_call.1} parent=1 // pred_region
      %39 = dma.done [#allocation9], 128
    $region17: #{tpu_custom_call.1} parent=1 // pred_fallthru
      _
    // Predicated region
    $region18: #{tpu_custom_call.1} parent=1 // pred_check
      _
    $region19: #{tpu_custom_call.1} parent=1 // pred_check_branch
      %41 = sbr.rel (0) target = $region21
    $region20: #{tpu_custom_call.1} parent=1 // pred_region
      %42 = dma.done [#allocation12], 128
    $region21: #{tpu_custom_call.1} parent=1 // pred_fallthru
      _
    %s43 = sld [smem:[#allocation7]]
    %v44 = vld [vmem:[#allocation8] sm:$0xff]
    %v45 = vstv %s43
    %v46 = vmul.f32 %v45, %v44
    %v47 = vld [vmem:[#allocation11] sm:$0xff]
    %vm48 = vcmask 261120
    %v50 = vsel %vm48, %v46, 0
    %v53 = vsel %vm48, %v47, 0
    %55 = vmatprep.subr.mxu0 0.0
    %56 = vmatpush1.xpose.msra.mxu0 %v53
    %57 = vmatprep.subr.mxu0 0.0
    %58 = vmatpush1.xpose.msra.mxu0 0.0
    %59 = vmatprep.subr.mxu0 0.0
    %60 = vmatpush1.xpose.msra.mxu0 0.0
    %61 = vmatprep.subr.mxu0 0.0
    %62 = vmatpush1.xpose.msra.mxu0 0.0
    %63 = vmatprep.subr.mxu0 0.0
    %64 = vmatpush1.xpose.msra.mxu0 0.0
    %65 = vmatprep.subr.mxu0 0.0
    %66 = vmatpush1.xpose.msra.mxu0 0.0
    %67 = vmatprep.subr.mxu0 0.0
    %68 = vmatpush1.xpose.msra.mxu0 0.0
    %69 = vmatprep.subr.mxu0 0.0
    %70 = vmatpush1.xpose.msra.mxu0 0.0
    %71 = vmatprep.subr.mxu0 0.0
    %72 = vmatpush1.xpose.msra.mxu0 0.0
    %73 = vmatprep.subr.mxu0 0.0
    %74 = vmatpush1.xpose.msra.mxu0 0.0
    %75 = vmatprep.subr.mxu0 0.0
    %76 = vmatpush1.xpose.msra.mxu0 0.0
    %77 = vmatprep.subr.mxu0 0.0
    %78 = vmatpush1.xpose.msra.mxu0 0.0
    %79 = vmatprep.subr.mxu0 0.0
    %80 = vmatpush1.xpose.msra.mxu0 0.0
    %81 = vmatprep.subr.mxu0 0.0
    %82 = vmatpush1.xpose.msra.mxu0 0.0
    %83 = vmatprep.subr.mxu0 0.0
    %84 = vmatpush1.xpose.msra.mxu0 0.0
    %85 = vmatprep.subr.mxu0 0.0
    %86 = vmatpush1.xpose.msra.mxu0 0.0
    %87 = vmatprep.subr.mxu0 0.0
    %88 = vmatpush1.xpose.msra.mxu0 0.0
    %89 = vmatprep.subr.mxu0 0.0
    %90 = vmatpush1.xpose.msra.mxu0 0.0
    %91 = vmatprep.subr.mxu0 0.0
    %92 = vmatpush1.xpose.msra.mxu0 0.0
    %93 = vmatprep.subr.mxu0 0.0
    %94 = vmatpush1.xpose.msra.mxu0 0.0
    %95 = vmatprep.subr.mxu0 0.0
    %96 = vmatpush1.xpose.msra.mxu0 0.0
    %97 = vmatprep.subr.mxu0 0.0
    %98 = vmatpush1.xpose.msra.mxu0 0.0
    %99 = vmatprep.subr.mxu0 0.0
    %100 = vmatpush1.xpose.msra.mxu0 0.0
    %101 = vmatprep.subr.mxu0 0.0
    %102 = vmatpush1.xpose.msra.mxu0 0.0
    %103 = vmatprep.subr.mxu0 0.0
    %104 = vmatpush1.xpose.msra.mxu0 0.0
    %105 = vmatprep.subr.mxu0 0.0
    %106 = vmatpush1.xpose.msra.mxu0 0.0
    %107 = vmatprep.subr.mxu0 0.0
    %108 = vmatpush1.xpose.msra.mxu0 0.0
    %109 = vmatprep.subr.mxu0 0.0
    %110 = vmatpush1.xpose.msra.mxu0 0.0
    %111 = vmatprep.subr.mxu0 0.0
    %112 = vmatpush1.xpose.msra.mxu0 0.0
    %113 = vmatprep.subr.mxu0 0.0
    %114 = vmatpush1.xpose.msra.mxu0 0.0
    %115 = vmatprep.subr.mxu0 0.0
    %116 = vmatpush1.xpose.msra.mxu0 0.0
    %117 = vmatprep.subr.mxu0 0.0
    %118 = vmatpush1.xpose.msra.mxu0 0.0
    %119 = vmatprep.mubr.f32.mxu0 0.0
    %120 = vmatmul.mubr.f32.gmra.mrb[0].mxu0 %v50
    %v121 = vpop.f32.mrb[0].mxu0
    %v122 = vadd.f32 0.0, %v121
    %v123 = vpop.f32.mrb[0].mxu0
    %124 = vdwg.mxu0
    %s125 = smul.u32 0, 8
    %v126 = vlaneseq
    %v127 = vshrl.u32 %v126, 7
    %v128 = vstv %s125
    %v129 = vadd.s32 %v128, %v127
    %v130 = vlaneseq
    %v131 = vand.u32 %v130, 127
    %vm132 = vcmp.eq.s32.totalorder %v131, %v129
    %v133 = vsel %vm132, %v122, 0.0
    %vm134 = vcmask 64512
    %v135 = vsel %vm134, %v133, 0.0
    %136 = vadd.xlane.f32.xlu0 %v135
    %v137 = vpop.xlane.xlu0 %136
    %v138 = vrot.slane %v135, 4
    %v139 = vadd.f32 %v135, %v138
    %v140 = vrot.slane %v139, 2
    %v141 = vadd.f32 %v139, %v140
    %v142 = vrot.slane %v141, 1
    %v143 = vadd.f32 %v141, %v142
    %v144 = vsel %vm134, %v122, -inf
    %145 = vmax.xlane.f32.xlu0 %v144
    %v146 = vpop.xlane.xlu0 %145
    %v147 = vsub.f32 %v122, %v146
    %v148 = vmul.f32 %v147, 1.442695
    %v149 = vpow.pop %v148
    %v150 = vsel %vm134, %v149, 0.0
    %151 = vadd.xlane.f32.xlu0 %v150
    %v152 = vpop.xlane.xlu0 %151
    %v153 = vlog2.pop %v152
    %v154 = vmul.f32 %v153, 0.6931472
    %v155 = vadd.f32 %v146, %v154
    %v156 = vsub.f32 %v155, %v137
    %vm157 = vcmask 7168
    %v158 = vsel %vm157, %v156, 0.0
    %159 = vadd.xlane.f32.xlu0 %v158
    %v160 = vpop.xlane.xlu0 %159
    %v161 = vrot.slane %v160, 4
    %v162 = vadd.f32 %v160, %v161
    %v163 = vrot.slane %v162, 2
    %v164 = vadd.f32 %v162, %v163
    %v165 = vrot.slane %v164, 1
    %v166 = vadd.f32 %v164, %v165
    %s167 = vtos %v166
    %v168 = vstv %s167
    %vm169 = vcmp.ge.f32.partialorder %v137, %v146
    %v170 = vsel %vm169, 1, 0
    %v171 = vcvt.s32.f32 %v170
    %v172 = vsel %vm157, %v171, 0.0
    %173 = vadd.xlane.f32.xlu0 %v172
    %v174 = vpop.xlane.xlu0 %173
    %v175 = vrot.slane %v174, 4
    %v176 = vadd.f32 %v174, %v175
    %v177 = vrot.slane %v176, 2
    %v178 = vadd.f32 %v176, %v177
    %v179 = vrot.slane %v178, 1
    %v180 = vadd.f32 %v178, %v179
    %s181 = vtos %v180
    %v182 = vstv %s181
    %v183 = vrot.slane %v144, 4
    %v184 = vmax.f32 %v144, %v183
    %v185 = vrot.slane %v184, 2
    %v186 = vmax.f32 %v184, %v185
    %v187 = vrot.slane %v186, 1
    %v188 = vmax.f32 %v186, %v187
    %v189 = vsub.f32 %v122, %v188
    %v190 = vmul.f32 %v189, 1.442695
    %v191 = vpow.pop %v190
    %v192 = vsel %vm134, %v191, 0.0
    %v193 = vrot.slane %v192, 4
    %v194 = vadd.f32 %v192, %v193
    %v195 = vrot.slane %v194, 2
    %v196 = vadd.f32 %v194, %v195
    %v197 = vrot.slane %v196, 1
    %v198 = vadd.f32 %v196, %v197
    %p199 = scmp.eq.s32.totalorder 0, 0
    // Predicated region
    $region22: #{tpu_custom_call.1} parent=1 // pred_check
      %p200 = pneg %p199
    $region23: #{tpu_custom_call.1} parent=1 // pred_check_branch
      %202 = sbr.rel (%p200) target = $region25
    $region24: #{tpu_custom_call.1} parent=1 // pred_region
      %vm203 = vcmask 57344
      %204 = vst.msk [vmem:[#allocation2] sm:$0x1] %vm203, %v188
      %205 = vst.msk [vmem:[#allocation3] sm:$0x1] %vm203, %v198
      %206 = vst.msk [vmem:[#allocation4] sm:$0x1] %vm203, %v143
      %vm207 = vcmask 0
      %208 = vst.msk [vmem:[#allocation5] sm:$0x1] %vm207, %v168
      %209 = vst.msk [vmem:[#allocation6] sm:$0x1] %vm207, %v182
    $region25: #{tpu_custom_call.1} parent=1 // pred_fallthru
      _
    %p210 = scmp.gt.s32.totalorder 0, 0
    // Predicated region
    $region26: #{tpu_custom_call.1} parent=1 // pred_check
      %p211 = pneg %p210
    $region27: #{tpu_custom_call.1} parent=1 // pred_check_branch
      %213 = sbr.rel (%p211) target = $region29
    $region28: #{tpu_custom_call.1} parent=1 // pred_region
      %v214 = vld [vmem:[#allocation2] sm:$0x1]
      %v215 = vmax.f32 %v214, %v188
      %v216 = vld [vmem:[#allocation3] sm:$0x1]
      %v217 = vsub.f32 %v214, %v215
      %v218 = vmul.f32 %v217, 1.442695
      %v219 = vpow.pop %v218
      %v220 = vmul.f32 %v216, %v219
      %v221 = vsub.f32 %v188, %v215
      %v222 = vmul.f32 %v221, 1.442695
      %v223 = vpow.pop %v222
      %v224 = vmul.f32 %v198, %v223
      %v225 = vadd.f32 %v220, %v224
      %vm226 = vcmask 57344
      %227 = vst.msk [vmem:[#allocation3] sm:$0x1] %vm226, %v225
      %228 = vst.msk [vmem:[#allocation2] sm:$0x1] %vm226, %v215
      %v229 = vld [vmem:[#allocation4] sm:$0x1]
      %v230 = vadd.f32 %v229, %v143
      %231 = vst.msk [vmem:[#allocation4] sm:$0x1] %vm226, %v230
      %v232 = vld [vmem:[#allocation5] sm:$0x1]
      %v233 = vadd.f32 %v232, %v168
      %vm234 = vcmask 0
      %235 = vst.msk [vmem:[#allocation5] sm:$0x1] %vm234, %v233
      %v236 = vld [vmem:[#allocation6] sm:$0x1]
      %v237 = vadd.f32 %v236, %v182
      %238 = vst.msk [vmem:[#allocation6] sm:$0x1] %vm234, %v237
    $region29: #{tpu_custom_call.1} parent=1 // pred_fallthru
      _
    // Predicated region
    $region30: #{tpu_custom_call.1} parent=1 // pred_check
      %p239 = pneg %p199
    $region31: #{tpu_custom_call.1} parent=1 // pred_check_branch
      %241 = sbr.rel (%p239) target = $region33
    $region32: #{tpu_custom_call.1} parent=1 // pred_region
      %v242 = vld [vmem:[#allocation2] sm:$0x1]
      %v243 = vld [vmem:[#allocation3] sm:$0x1]
      %v244 = vlog2.pop %v243
      %v245 = vmul.f32 %v244, 0.6931472
      %v246 = vadd.f32 %v242, %v245
      %v247 = vld [vmem:[#allocation4] sm:$0x1]
      %v248 = vsub.f32 %v246, %v247
      %vm249 = vcmask 57344
      %v250 = vsel %vm249, %v248, 0.0
      %251 = vadd.xlane.f32.xlu0 %v250
      %v252 = vpop.xlane.xlu0 %251
      %v253 = vrot.slane %v252, 4
      %v254 = vadd.f32 %v252, %v253
      %v255 = vrot.slane %v254, 2
      %v256 = vadd.f32 %v254, %v255
      %v257 = vrot.slane %v256, 1
      %v258 = vadd.f32 %v256, %v257
      %s259 = vtos %v258
      %v260 = vstv %s259
      %vm261 = vcmp.ge.f32.partialorder %v247, %v242
      %v262 = vsel %vm261, 1, 0
      %v263 = vcvt.s32.f32 %v262
      %v264 = vsel %vm249, %v263, 0.0
      %265 = vadd.xlane.f32.xlu0 %v264
      %v266 = vpop.xlane.xlu0 %265
      %v267 = vrot.slane %v266, 4
      %v268 = vadd.f32 %v266, %v267
      %v269 = vrot.slane %v268, 2
      %v270 = vadd.f32 %v268, %v269
      %v271 = vrot.slane %v270, 1
      %v272 = vadd.f32 %v270, %v271
      %s273 = vtos %v272
      %v274 = vstv %s273
      %v275 = vld [vmem:[#allocation5] sm:$0x1]
      %v276 = vadd.f32 %v275, %v260
      %v277 = vmul.f32 %v276, 0.0625
      %vm278 = vcmask 0
      %279 = vst.msk [vmem:[#allocation13] sm:$0x1] %vm278, %v277
      %v280 = vld [vmem:[#allocation6] sm:$0x1]
      %v281 = vadd.f32 %v280, %v274
      %v282 = vmul.f32 %v281, 0.0625
      %283 = vst.msk [vmem:[#allocation14] sm:$0x1] %vm278, %v282
    $region33: #{tpu_custom_call.1} parent=1 // pred_fallthru
      _
    // Predicated region
    $region34: #{tpu_custom_call.1} parent=1 // pred_check
      _
    $region35: #{tpu_custom_call.1} parent=1 // pred_check_branch
      %285 = sbr.rel (0) target = $region37
    $region36: #{tpu_custom_call.1} parent=1 // pred_region
      %s287 = ssub.s32 16, 16
      %288 = vsyncadd [#allocation10], %s287
      %s290 = sshll.u32 [#allocation13], 4
      %s291 = int_to_ptr.vmem [resolvable:$true] %s290
      %293 = dma.vmem_to_hbm [thread:$0]  %s291, 16, %s3, [#allocation10]
    $region37: #{tpu_custom_call.1} parent=1 // pred_fallthru
      _
    // Predicated region
    $region38: #{tpu_custom_call.1} parent=1 // pred_check
      _
    $region39: #{tpu_custom_call.1} parent=1 // pred_check_branch
      %295 = sbr.rel (0) target = $region41
    $region40: #{tpu_custom_call.1} parent=1 // pred_region
      %s297 = ssub.s32 16, 16
      %298 = vsyncadd [#allocation15], %s297
      %s300 = sshll.u32 [#allocation14], 4
      %s301 = int_to_ptr.vmem [resolvable:$true] %s300
      %303 = dma.vmem_to_hbm [thread:$0]  %s301, 16, %s4, [#allocation15]
    $region41: #{tpu_custom_call.1} parent=1 // pred_fallthru
      _
    // Predicated region
    $region42: #{tpu_custom_call.1} parent=1 // pred_check
      _
    $region43: #{tpu_custom_call.1} parent=1 // pred_check_branch
      %305 = sbr.rel (0) target = $region45
    $region44: #{tpu_custom_call.1} parent=1 // pred_region
      %306 = dma.done [#allocation10], 16
    $region45: #{tpu_custom_call.1} parent=1 // pred_fallthru
      _
    // Predicated region
    $region46: #{tpu_custom_call.1} parent=1 // pred_check
      _
    $region47: #{tpu_custom_call.1} parent=1 // pred_check_branch
      %308 = sbr.rel (0) target = $region49
    $region48: #{tpu_custom_call.1} parent=1 // pred_region
      %309 = dma.done [#allocation15], 16
    $region49: #{tpu_custom_call.1} parent=1 // pred_fallthru
      _
    %310 = vsyncpa [#allocation9], 1
    %311 = vsyncpa [#allocation12], 1
    %312 = vsyncpa [#allocation10], 1
    %313 = vsyncpa [#allocation15], 1

// kernel: tpu_custom_call.1
$region0: #{tpu_custom_call.1}
  #allocation0 [shape = 'u32[]', space=smem, size = 0x4, offset = 0x4, fixed_abs, tag = 'smem constant byte address 0x4 - core index']
  #allocation1 [shape = 'u32[144,128]{1,0:T(1,128)}', space=vmem, size = 0x12000, scoped, tag = 'internal scratch']
  #allocation2 [shape = 'f32[1,8]{1,0:T(1,128)}', space=vmem, size = 0x200, scoped, tag = 'scratch operand']
  #allocation3 [shape = 'f32[1,8]{1,0:T(1,128)}', space=vmem, size = 0x200, scoped, tag = 'scratch operand']
  #allocation4 [shape = 'f32[1,8]{1,0:T(1,128)}', space=vmem, size = 0x200, scoped, tag = 'scratch operand']
  #allocation5 [shape = 'f32[1,1]{1,0:T(1,128)}', space=vmem, size = 0x200, scoped, tag = 'scratch operand']
  #allocation6 [shape = 'f32[1,1]{1,0:T(1,128)}', space=vmem, size = 0x200, scoped, tag = 'scratch operand']
  #allocation7 [shape = 'f32[1]{0:T(128)S(6)}', space=smem, size = 0x200, scoped, tag = 'scoped memory for tpu_custom_call.1']
  %s0 = inlined_call_operand.<no memory space> [shape: f32[1], index: 0, kind: input, shape index: {}]
  %s1 = inlined_call_operand.hbm [shape: f32[8,32], index: 1, kind: input, shape index: {}]
  %s2 = inlined_call_operand.hbm [shape: f32[8,32], index: 2, kind: input, shape index: {}]
  %s3 = inlined_call_operand.hbm [shape: f32[1,1], index: 3, kind: output, shape index: {0}]
  %s4 = inlined_call_operand.hbm [shape: f32[1,1], index: 4, kind: output, shape index: {1}]
  %5 = xla_tuple %s3, %s4
  %s6 = sld [smem:[#allocation0]]
  $region50: #{tpu_custom_call.1} parent=0
    _
  %s8 = ssub.s32 1, %s6
  %s9 = scalar_select 0, %s8, %s6
  %10 = sst [smem:[#allocation7]] %s0
  $region1: #{tpu_custom_call.1} parent=0
    #allocation8 [shape = 'u8[4096]{0}', space=vmem, size = 0x1000, scoped, tag = 'input window, operand 1, single buffered']
    #allocation9 [shape = 's32[1]{0}', space=sflag, size = 0x4, scoped, tag = 'scoped memory for tpu_custom_call.1']
    #allocation10 [shape = 's32[1]{0}', space=sflag, size = 0x4, scoped, tag = 'scoped memory for tpu_custom_call.1']
    #allocation11 [shape = 'u8[4096]{0}', space=vmem, size = 0x1000, scoped, tag = 'input window, operand 2, single buffered']
    #allocation12 [shape = 's32[1]{0}', space=sflag, size = 0x4, scoped, tag = 'scoped memory for tpu_custom_call.1']
    #allocation13 [shape = 'u8[512]{0}', space=vmem, size = 0x400, scoped, tag = 'output window, operand 0, single buffered']
    #allocation14 [shape = 'u8[512]{0}', space=vmem, size = 0x400, scoped, tag = 'output window, operand 1, single buffered']
    #allocation15 [shape = 's32[1]{0}', space=sflag, size = 0x4, scoped, tag = 'scoped memory for tpu_custom_call.1']
    %11 = vsyncpa [#allocation9], 0
    %12 = vsyncpa [#allocation12], 0
    %13 = vsyncpa [#allocation10], 0
    %14 = vsyncpa [#allocation15], 0
    // Predicated region
    $region2: #{tpu_custom_call.1} parent=1 // pred_check
      _
    $region3: #{tpu_custom_call.1} parent=1 // pred_check_branch
      %16 = sbr.rel (0) target = $region5
    $region4: #{tpu_custom_call.1} parent=1 // pred_region
      _
    $region5: #{tpu_custom_call.1} parent=1 // pred_fallthru
      _
    // Predicated region
    $region6: #{tpu_custom_call.1} parent=1 // pred_check
      _
    $region7: #{tpu_custom_call.1} parent=1 // pred_check_branch
      %18 = sbr.rel (0) target = $region9
    $region8: #{tpu_custom_call.1} parent=1 // pred_region
      %s20 = ssub.s32 128, 128
      %21 = vsyncadd [#allocation9], %s20
      %s23 = sshll.u32 [#allocation8], 4
      %s24 = int_to_ptr.vmem [resolvable:$true] %s23
      %26 = dma.hbm_to_vmem [thread:$0]  %s1, 128, %s24, [#allocation9]
    $region9: #{tpu_custom_call.1} parent=1 // pred_fallthru
      _
    // Predicated region
    $region10: #{tpu_custom_call.1} parent=1 // pred_check
      _
    $region11: #{tpu_custom_call.1} parent=1 // pred_check_branch
      %28 = sbr.rel (0) target = $region13
    $region12: #{tpu_custom_call.1} parent=1 // pred_region
      %s30 = ssub.s32 128, 128
      %31 = vsyncadd [#allocation12], %s30
      %s33 = sshll.u32 [#allocation11], 4
      %s34 = int_to_ptr.vmem [resolvable:$true] %s33
      %36 = dma.hbm_to_vmem [thread:$0]  %s2, 128, %s34, [#allocation12]
    $region13: #{tpu_custom_call.1} parent=1 // pred_fallthru
      _
    // Predicated region
    $region14: #{tpu_custom_call.1} parent=1 // pred_check
      _
    $region15: #{tpu_custom_call.1} parent=1 // pred_check_branch
      %38 = sbr.rel (0) target = $region17
    $region16: #{tpu_custom_call.1} parent=1 // pred_region
      %39 = dma.done [#allocation9], 128
    $region17: #{tpu_custom_call.1} parent=1 // pred_fallthru
      _
    // Predicated region
    $region18: #{tpu_custom_call.1} parent=1 // pred_check
      _
    $region19: #{tpu_custom_call.1} parent=1 // pred_check_branch
      %41 = sbr.rel (0) target = $region21
    $region20: #{tpu_custom_call.1} parent=1 // pred_region
      %42 = dma.done [#allocation12], 128
    $region21: #{tpu_custom_call.1} parent=1 // pred_fallthru
      _
    %s43 = sld [smem:[#allocation7]]
    %v44 = vld [vmem:[#allocation8] sm:$0xff]
    %v45 = vstv %s43
    %v46 = vmul.f32 %v45, %v44
    %v47 = vld [vmem:[#allocation11] sm:$0xff]
    %vm48 = vcmask 261120
    %v50 = vsel %vm48, %v46, 0
    %v53 = vsel %vm48, %v47, 0
    %55 = vmatprep.subr.mxu0 0.0
    %56 = vmatpush1.xpose.msra.mxu0 %v53
    %57 = vmatprep.subr.mxu0 0.0
    %58 = vmatpush1.xpose.msra.mxu0 0.0
    %59 = vmatprep.subr.mxu0 0.0
    %60 = vmatpush1.xpose.msra.mxu0 0.0
    %61 = vmatprep.subr.mxu0 0.0
    %62 = vmatpush1.xpose.msra.mxu0 0.0
    %63 = vmatprep.subr.mxu0 0.0
    %64 = vmatpush1.xpose.msra.mxu0 0.0
    %65 = vmatprep.subr.mxu0 0.0
    %66 = vmatpush1.xpose.msra.mxu0 0.0
    %67 = vmatprep.subr.mxu0 0.0
    %68 = vmatpush1.xpose.msra.mxu0 0.0
    %69 = vmatprep.subr.mxu0 0.0
    %70 = vmatpush1.xpose.msra.mxu0 0.0
    %71 = vmatprep.subr.mxu0 0.0
    %72 = vmatpush1.xpose.msra.mxu0 0.0
    %73 = vmatprep.subr.mxu0 0.0
    %74 = vmatpush1.xpose.msra.mxu0 0.0
    %75 = vmatprep.subr.mxu0 0.0
    %76 = vmatpush1.xpose.msra.mxu0 0.0
    %77 = vmatprep.subr.mxu0 0.0
    %78 = vmatpush1.xpose.msra.mxu0 0.0
    %79 = vmatprep.subr.mxu0 0.0
    %80 = vmatpush1.xpose.msra.mxu0 0.0
    %81 = vmatprep.subr.mxu0 0.0
    %82 = vmatpush1.xpose.msra.mxu0 0.0
    %83 = vmatprep.subr.mxu0 0.0
    %84 = vmatpush1.xpose.msra.mxu0 0.0
    %85 = vmatprep.subr.mxu0 0.0
    %86 = vmatpush1.xpose.msra.mxu0 0.0
    %87 = vmatprep.subr.mxu0 0.0
    %88 = vmatpush1.xpose.msra.mxu0 0.0
    %89 = vmatprep.subr.mxu0 0.0
    %90 = vmatpush1.xpose.msra.mxu0 0.0
    %91 = vmatprep.subr.mxu0 0.0
    %92 = vmatpush1.xpose.msra.mxu0 0.0
    %93 = vmatprep.subr.mxu0 0.0
    %94 = vmatpush1.xpose.msra.mxu0 0.0
    %95 = vmatprep.subr.mxu0 0.0
    %96 = vmatpush1.xpose.msra.mxu0 0.0
    %97 = vmatprep.subr.mxu0 0.0
    %98 = vmatpush1.xpose.msra.mxu0 0.0
    %99 = vmatprep.subr.mxu0 0.0
    %100 = vmatpush1.xpose.msra.mxu0 0.0
    %101 = vmatprep.subr.mxu0 0.0
    %102 = vmatpush1.xpose.msra.mxu0 0.0
    %103 = vmatprep.subr.mxu0 0.0
    %104 = vmatpush1.xpose.msra.mxu0 0.0
    %105 = vmatprep.subr.mxu0 0.0
    %106 = vmatpush1.xpose.msra.mxu0 0.0
    %107 = vmatprep.subr.mxu0 0.0
    %108 = vmatpush1.xpose.msra.mxu0 0.0
    %109 = vmatprep.subr.mxu0 0.0
    %110 = vmatpush1.xpose.msra.mxu0 0.0
    %111 = vmatprep.subr.mxu0 0.0
    %112 = vmatpush1.xpose.msra.mxu0 0.0
    %113 = vmatprep.subr.mxu0 0.0
    %114 = vmatpush1.xpose.msra.mxu0 0.0
    %115 = vmatprep.subr.mxu0 0.0
    %116 = vmatpush1.xpose.msra.mxu0 0.0
    %117 = vmatprep.subr.mxu0 0.0
    %118 = vmatpush1.xpose.msra.mxu0 0.0
    %119 = vmatprep.mubr.f32.mxu0 0.0
    %120 = vmatmul.mubr.f32.gmra.mrb[0].mxu0 %v50
    %v121 = vpop.f32.mrb[0].mxu0
    %v122 = vadd.f32 0.0, %v121
    %v123 = vpop.f32.mrb[0].mxu0
    %124 = vdwg.mxu0
    %s125 = smul.u32 0, 8
    %v126 = vlaneseq
    %v127 = vshrl.u32 %v126, 7
    %v128 = vstv %s125
    %v129 = vadd.s32 %v128, %v127
    %v130 = vlaneseq
    %v131 = vand.u32 %v130, 127
    %vm132 = vcmp.eq.s32.totalorder %v131, %v129
    %v133 = vsel %vm132, %v122, 0.0
    %vm134 = vcmask 64512
    %v135 = vsel %vm134, %v133, 0.0
    %136 = vadd.xlane.f32.xlu0 %v135
    %v137 = vpop.xlane.xlu0 %136
    %v138 = vrot.slane %v135, 4
    %v139 = vadd.f32 %v135, %v138
    %v140 = vrot.slane %v139, 2
    %v141 = vadd.f32 %v139, %v140
    %v142 = vrot.slane %v141, 1
    %v143 = vadd.f32 %v141, %v142
    %v144 = vsel %vm134, %v122, -inf
    %145 = vmax.xlane.f32.xlu0 %v144
    %v146 = vpop.xlane.xlu0 %145
    %v147 = vsub.f32 %v122, %v146
    %v148 = vmul.f32 %v147, 1.442695
    %v149 = vpow.pop %v148
    %v150 = vsel %vm134, %v149, 0.0
    %151 = vadd.xlane.f32.xlu0 %v150
    %v152 = vpop.xlane.xlu0 %151
    %v153 = vlog2.pop %v152
    %v154 = vmul.f32 %v153, 0.6931472
    %v155 = vadd.f32 %v146, %v154
    %v156 = vsub.f32 %v155, %v137
    %vm157 = vcmask 7168
    %v158 = vsel %vm157, %v156, 0.0
    %159 = vadd.xlane.f32.xlu0 %v158
    %v160 = vpop.xlane.xlu0 %159
    %v161 = vrot.slane %v160, 4
    %v162 = vadd.f32 %v160, %v161
    %v163 = vrot.slane %v162, 2
    %v164 = vadd.f32 %v162, %v163
    %v165 = vrot.slane %v164, 1
    %v166 = vadd.f32 %v164, %v165
    %s167 = vtos %v166
    %v168 = vstv %s167
    %vm169 = vcmp.ge.f32.partialorder %v137, %v146
    %v170 = vsel %vm169, 1, 0
    %v171 = vcvt.s32.f32 %v170
    %v172 = vsel %vm157, %v171, 0.0
    %173 = vadd.xlane.f32.xlu0 %v172
    %v174 = vpop.xlane.xlu0 %173
    %v175 = vrot.slane %v174, 4
    %v176 = vadd.f32 %v174, %v175
    %v177 = vrot.slane %v176, 2
    %v178 = vadd.f32 %v176, %v177
    %v179 = vrot.slane %v178, 1
    %v180 = vadd.f32 %v178, %v179
    %s181 = vtos %v180
    %v182 = vstv %s181
    %v183 = vrot.slane %v144, 4
    %v184 = vmax.f32 %v144, %v183
    %v185 = vrot.slane %v184, 2
    %v186 = vmax.f32 %v184, %v185
    %v187 = vrot.slane %v186, 1
    %v188 = vmax.f32 %v186, %v187
    %v189 = vsub.f32 %v122, %v188
    %v190 = vmul.f32 %v189, 1.442695
    %v191 = vpow.pop %v190
    %v192 = vsel %vm134, %v191, 0.0
    %v193 = vrot.slane %v192, 4
    %v194 = vadd.f32 %v192, %v193
    %v195 = vrot.slane %v194, 2
    %v196 = vadd.f32 %v194, %v195
    %v197 = vrot.slane %v196, 1
    %v198 = vadd.f32 %v196, %v197
    %p199 = scmp.eq.s32.totalorder 0, 0
    // Predicated region
    $region22: #{tpu_custom_call.1} parent=1 // pred_check
      %p200 = pneg %p199
    $region23: #{tpu_custom_call.1} parent=1 // pred_check_branch
      %202 = sbr.rel (%p200) target = $region25
    $region24: #{tpu_custom_call.1} parent=1 // pred_region
      %vm203 = vcmask 57344
      %204 = vst.msk [vmem:[#allocation2] sm:$0x1] %vm203, %v188
      %205 = vst.msk [vmem:[#allocation3] sm:$0x1] %vm203, %v198
      %206 = vst.msk [vmem:[#allocation4] sm:$0x1] %vm203, %v143
      %vm207 = vcmask 0
      %208 = vst.msk [vmem:[#allocation5] sm:$0x1] %vm207, %v168
      %209 = vst.msk [vmem:[#allocation6] sm:$0x1] %vm207, %v182
    $region25: #{tpu_custom_call.1} parent=1 // pred_fallthru
      _
    %p210 = scmp.gt.s32.totalorder 0, 0
    // Predicated region
    $region26: #{tpu_custom_call.1} parent=1 // pred_check
      %p211 = pneg %p210
    $region27: #{tpu_custom_call.1} parent=1 // pred_check_branch
      %213 = sbr.rel (%p211) target = $region29
    $region28: #{tpu_custom_call.1} parent=1 // pred_region
      %v214 = vld [vmem:[#allocation2] sm:$0x1]
      %v215 = vmax.f32 %v214, %v188
      %v216 = vld [vmem:[#allocation3] sm:$0x1]
      %v217 = vsub.f32 %v214, %v215
      %v218 = vmul.f32 %v217, 1.442695
      %v219 = vpow.pop %v218
      %v220 = vmul.f32 %v216, %v219
      %v221 = vsub.f32 %v188, %v215
      %v222 = vmul.f32 %v221, 1.442695
      %v223 = vpow.pop %v222
      %v224 = vmul.f32 %v198, %v223
      %v225 = vadd.f32 %v220, %v224
      %vm226 = vcmask 57344
      %227 = vst.msk [vmem:[#allocation3] sm:$0x1] %vm226, %v225
      %228 = vst.msk [vmem:[#allocation2] sm:$0x1] %vm226, %v215
      %v229 = vld [vmem:[#allocation4] sm:$0x1]
      %v230 = vadd.f32 %v229, %v143
      %231 = vst.msk [vmem:[#allocation4] sm:$0x1] %vm226, %v230
      %v232 = vld [vmem:[#allocation5] sm:$0x1]
      %v233 = vadd.f32 %v232, %v168
      %vm234 = vcmask 0
      %235 = vst.msk [vmem:[#allocation5] sm:$0x1] %vm234, %v233
      %v236 = vld [vmem:[#allocation6] sm:$0x1]
      %v237 = vadd.f32 %v236, %v182
      %238 = vst.msk [vmem:[#allocation6] sm:$0x1] %vm234, %v237
    $region29: #{tpu_custom_call.1} parent=1 // pred_fallthru
      _
    // Predicated region
    $region30: #{tpu_custom_call.1} parent=1 // pred_check
      %p239 = pneg %p199
    $region31: #{tpu_custom_call.1} parent=1 // pred_check_branch
      %241 = sbr.rel (%p239) target = $region33
    $region32: #{tpu_custom_call.1} parent=1 // pred_region
      %v242 = vld [vmem:[#allocation2] sm:$0x1]
      %v243 = vld [vmem:[#allocation3] sm:$0x1]
      %v244 = vlog2.pop %v243
      %v245 = vmul.f32 %v244, 0.6931472
      %v246 = vadd.f32 %v242, %v245
      %v247 = vld [vmem:[#allocation4] sm:$0x1]
      %v248 = vsub.f32 %v246, %v247
      %vm249 = vcmask 57344
      %v250 = vsel %vm249, %v248, 0.0
      %251 = vadd.xlane.f32.xlu0 %v250
      %v252 = vpop.xlane.xlu0 %251
      %v253 = vrot.slane %v252, 4
      %v254 = vadd.f32 %v252, %v253
      %v255 = vrot.slane %v254, 2
      %v256 = vadd.f32 %v254, %v255
      %v257 = vrot.slane %v256, 1
      %v258 = vadd.f32 %v256, %v257
      %s259 = vtos %v258
      %v260 = vstv %s259
      %vm261 = vcmp.ge.f32.partialorder %v247, %v242
      %v262 = vsel %vm261, 1, 0
      %v263 = vcvt.s32.f32 %v262
      %v264 = vsel %vm249, %v263, 0.0
      %265 = vadd.xlane.f32.xlu0 %v264
      %v266 = vpop.xlane.xlu0 %265
      %v267 = vrot.slane %v266, 4
      %v268 = vadd.f32 %v266, %v267
      %v269 = vrot.slane %v268, 2
      %v270 = vadd.f32 %v268, %v269
      %v271 = vrot.slane %v270, 1
      %v272 = vadd.f32 %v270, %v271
      %s273 = vtos %v272
      %v274 = vstv %s273
      %v275 = vld [vmem:[#allocation5] sm:$0x1]
      %v276 = vadd.f32 %v275, %v260
      %v277 = vmul.f32 %v276, 0.0625
      %vm278 = vcmask 0
      %279 = vst.msk [vmem:[#allocation13] sm:$0x1] %vm278, %v277
      %v280 = vld [vmem:[#allocation6] sm:$0x1]
      %v281 = vadd.f32 %v280, %v274
      %v282 = vmul.f32 %v281, 0.0625
      %283 = vst.msk [vmem:[#allocation14] sm:$0x1] %vm278, %v282
    $region33: #{tpu_custom_call.1} parent=1 // pred_fallthru
      _
    // Predicated region
    $region34: #{tpu_custom_call.1} parent=1 // pred_check
      _
    $region35: #{tpu_custom_call.1} parent=1 // pred_check_branch
      %285 = sbr.rel (0) target = $region37
    $region36: #{tpu_custom_call.1} parent=1 // pred_region
      %s287 = ssub.s32 16, 16
      %288 = vsyncadd [#allocation10], %s287
      %s290 = sshll.u32 [#allocation13], 4
      %s291 = int_to_ptr.vmem [resolvable:$true] %s290
      %293 = dma.vmem_to_hbm [thread:$0]  %s291, 16, %s3, [#allocation10]
    $region37: #{tpu_custom_call.1} parent=1 // pred_fallthru
      _
    // Predicated region
    $region38: #{tpu_custom_call.1} parent=1 // pred_check
      _
    $region39: #{tpu_custom_call.1} parent=1 // pred_check_branch
      %295 = sbr.rel (0) target = $region41
    $region40: #{tpu_custom_call.1} parent=1 // pred_region
      %s297 = ssub.s32 16, 16
      %298 = vsyncadd [#allocation15], %s297
      %s300 = sshll.u32 [#allocation14], 4
      %s301 = int_to_ptr.vmem [resolvable:$true] %s300
      %303 = dma.vmem_to_hbm [thread:$0]  %s301, 16, %s4, [#allocation15]
    $region41: #{tpu_custom_call.1} parent=1 // pred_fallthru
      _
    // Predicated region
    $region42: #{tpu_custom_call.1} parent=1 // pred_check
      _
    $region43: #{tpu_custom_call.1} parent=1 // pred_check_branch
      %305 = sbr.rel (0) target = $region45
    $region44: #{tpu_custom_call.1} parent=1 // pred_region
      %306 = dma.done [#allocation10], 16
    $region45: #{tpu_custom_call.1} parent=1 // pred_fallthru
      _
    // Predicated region
    $region46: #{tpu_custom_call.1} parent=1 // pred_check
      _
    $region47: #{tpu_custom_call.1} parent=1 // pred_check_branch
      %308 = sbr.rel (0) target = $region49
    $region48: #{tpu_custom_call.1} parent=1 // pred_region
      %309 = dma.done [#allocation15], 16
    $region49: #{tpu_custom_call.1} parent=1 // pred_fallthru
      _
    %310 = vsyncpa [#allocation9], 1
    %311 = vsyncpa [#allocation12], 1
    %312 = vsyncpa [#allocation10], 1
    %313 = vsyncpa [#allocation15], 1

</llo_original>
